<compile_context>
chip_gen: v6e
topology: v6e:2x2x1
jax: 0.10.0
libtpu: 0.0.40
codegen_flags: <defaults>
</compile_context>

<pallas_src>
import functools

import jax
import jax.numpy as jnp
from jax.experimental import pallas as pl
from jax.experimental.pallas import tpu as pltpu


# ----------------------------------------------------------------------------
# matplotlib 'jet' colormap, piecewise-linear analytic form, with the trailing
# *255 of the reference folded into the constants at trace time.
#   channel(t) = clip(y0 + sum_i slope_i * clip(t - x0_i, 0, x1_i - x0_i), 0, 1)
# ----------------------------------------------------------------------------
_JET_RED = (0.0, ((0.35, 0.66, 1.0 / 0.31), (0.89, 1.00, -0.5 / 0.11)))
_JET_GREEN = (0.0, ((0.125, 0.375, 1.0 / 0.25), (0.64, 0.91, -1.0 / 0.27)))
_JET_BLUE = (0.5, ((0.00, 0.11, 0.5 / 0.11), (0.34, 0.65, -1.0 / 0.31)))


def _jet_channel_x255(t, spec):
    y0, segs = spec
    y = jnp.full_like(t, 255.0 * y0)
    for (x0, x1, slope) in segs:
        y = y + (255.0 * slope) * jnp.clip(t - x0, 0.0, x1 - x0)
    return jnp.clip(y, 0.0, 255.0)


# ----------------------------------------------------------------------------
# Pass 1: depth head (MLP) + per-image min/max accumulation.
#   grid step (b, t):  x[3, T] -> depth[1, T], running min/max per image
# ----------------------------------------------------------------------------
def depth_head_kernel(x_ref, w1t_ref, b1t_ref, w2t_ref, b2_ref,
                      depth_ref, mn_ref, mx_ref, *, compute_dtype):
    t = pl.program_id(1)
    x = x_ref[0]                                          # [3, T] lane-dense

    # Layer 1 on the MXU; feature-extractor affine folded into w1t / b1t.
    h = jnp.dot(w1t_ref[...], x, preferred_element_type=jnp.float32)
    h = h + b1t_ref[...]                                  # [hidden, T] f32

    # Cheap sigmoid-GELU (== 0.5*x*(1+tanh(0.851x))) for the stand-in head;
    # runs in bf16 on v6e/v7x (bf16 VPU/EUP), f32 on v5e.
    h = h.astype(compute_dtype)
    h = (0.5 * h) * (1.0 + jnp.tanh(0.851 * h))

    # Layer 2 on the MXU instead of a VPU multiply + sublane reduce.
    d = jnp.dot(w2t_ref[...], h, preferred_element_type=jnp.float32)
    d = d + b2_ref[0]                                     # [1, T] predicted_depth
    depth_ref[0] = d

    # Per-image min/max carried in resident output blocks across the
    # 'arbitrary' pixel-tile axis.
    @pl.when(t == 0)
    def _init():
        mn_ref[...] = jnp.full(mn_ref.shape, jnp.inf, jnp.float32)
        mx_ref[...] = jnp.full(mx_ref.shape, -jnp.inf, jnp.float32)

    mn_ref[...] = jnp.minimum(mn_ref[...], jnp.min(d))
    mx_ref[...] = jnp.maximum(mx_ref[...], jnp.max(d))


def _pick_pixel_tile(hw, target=32768):
    """Largest multiple of 128 that divides hw and is <= target."""
    best, t = 128, 128
    while t <= min(hw, target):
        if hw % t == 0:
            best = t
        t += 128
    return best


def run_depth_head(x, w1t, b1t, w2t, b2, compute_dtype):
    """x: [B, 3, HW] f32 -> depth [B, 1, HW] f32, dmin/dmax [B, 1, 1] f32."""
    B, C, HW = x.shape
    hidden = w1t.shape[0]
    T = _pick_pixel_tile(HW)
    nt = HW // T
    kernel = functools.partial(depth_head_kernel, compute_dtype=compute_dtype)
    return pl.pallas_call(
        kernel,
        out_shape=(jax.ShapeDtypeStruct((B, 1, HW), jnp.float32),
                   jax.ShapeDtypeStruct((B, 1, 1), jnp.float32),
                   jax.ShapeDtypeStruct((B, 1, 1), jnp.float32)),
        grid=(B, nt),
        in_specs=[
            pl.BlockSpec((1, C, T), lambda b, t: (b, 0, t)),      # image tile
            pl.BlockSpec((hidden, C), lambda b, t: (0, 0)),       # W1^T (folded affine)
            pl.BlockSpec((hidden, 1), lambda b, t: (0, 0)),       # b1^T (folded affine)
            pl.BlockSpec((1, hidden), lambda b, t: (0, 0)),       # W2^T (row)
            pl.BlockSpec(memory_space=pltpu.MemorySpace.SMEM),    # b2 scalar
        ],
        out_specs=(
            pl.BlockSpec((1, 1, T), lambda b, t: (b, 0, t)),      # depth tile
            pl.BlockSpec((1, 1, 1), lambda b, t: (b, 0, 0)),      # running min
            pl.BlockSpec((1, 1, 1), lambda b, t: (b, 0, 0)),      # running max
        ),
        compiler_params=pltpu.CompilerParams(
            dimension_semantics=("parallel", "arbitrary"),
            vmem_limit_bytes=32 * 1024 * 1024),
    )(x, w1t, b1t, w2t, b2)


# ----------------------------------------------------------------------------
# Pass 2: per-image rescale + jet colormap on sublane-dense [TR, 128] tiles.
# ----------------------------------------------------------------------------
def colorize_kernel(depth_ref, mn_ref, scale_ref, rgb_ref):
    b = pl.program_id(0)
    d = depth_ref[0]                                      # [TR, 128] dense vregs
    mn = mn_ref[b]                                        # SMEM scalars
    scale = scale_ref[b]                                  # 255/(max-min+1e-8), hoisted

    dm = (d - mn + 1e-8) * scale                          # == 255*(d-min+1e-8)/(max-min+1e-8)
    idx = jnp.clip(jnp.floor(dm), 0.0, 255.0)             # np .astype(uint8) == floor here
    t = idx * (1.0 / 255.0)                               # LUT[i] == jet(i/255)

    # Per-channel dense stores (no concatenate, no [3, HW] temporary).
    rgb_ref[0, 0] = _jet_channel_x255(t, _JET_RED)
    rgb_ref[0, 1] = _jet_channel_x255(t, _JET_GREEN)
    rgb_ref[0, 2] = _jet_channel_x255(t, _JET_BLUE)


def _pick_row_tile(rows, target=256):
    """Largest divisor of rows that is <= target and a multiple of 8 (or == rows)."""
    best = None
    for d in range(1, min(rows, target) + 1):
        if rows % d == 0 and (d % 8 == 0 or d == rows):
            best = d
    return best if best is not None else rows


def run_colorize(depth_rows, dmin, scale):
    """depth_rows: [B, R, 128] f32; dmin/scale: [B] f32 -> rgb [B, 3, R, 128]."""
    B, R, _ = depth_rows.shape
    TR = _pick_row_tile(R)
    return pl.pallas_call(
        colorize_kernel,
        out_shape=jax.ShapeDtypeStruct((B, 3, R, 128), jnp.float32),
        grid=(B, R // TR),
        in_specs=[
            pl.BlockSpec((1, TR, 128), lambda b, r: (b, r, 0)),
            pl.BlockSpec(memory_space=pltpu.MemorySpace.SMEM),    # per-image min
            pl.BlockSpec(memory_space=pltpu.MemorySpace.SMEM),    # per-image scale
        ],
        out_specs=pl.BlockSpec((1, 3, TR, 128), lambda b, r: (b, 0, r, 0)),
        compiler_params=pltpu.CompilerParams(
            dimension_semantics=("parallel", "parallel"),
            vmem_limit_bytes=32 * 1024 * 1024),
    )(depth_rows, dmin, scale)


# ----------------------------------------------------------------------------
# Wrapper reproducing DepthBlock.forward semantics
# ----------------------------------------------------------------------------
def _pick_compute_dtype():
    """bf16 VPU/EUP exists on v6e and later; keep f32 on v5e and older."""
    try:
        kind = jax.devices()[0].device_kind.lower()
    except Exception:
        return jnp.float32
    if any(tag in kind for tag in ("v6", "v7", "tpu7", "trillium", "ironwood")):
        return jnp.bfloat16
    return jnp.float32


def depth_block_forward(images, params, return_rgb=True, single_return=True):
    """images: [B, 3, H, W] float32 in [0, 1] (NCHW, like the PyTorch module)."""
    B, C, H, W = images.shape
    HW = H * W
    assert HW % 128 == 0, "H*W must be a multiple of 128 (pad odd sizes)."
    x = images.reshape(B, C, HW)          # free contiguous view of NCHW, no transpose

    # Fold (255*x - 0.5)/0.5 = 510*x - 1 into layer 1, pre-transposed for the
    # channels-as-contraction layout:  h = W1'^T @ x + b1'^T.
    w1, b1, w2, b2 = params["w1"], params["b1"], params["w2"], params["b2"]
    compute_dtype = _pick_compute_dtype()
    w1t = (510.0 * w1).T                                      # [hidden, 3]
    b1t = (b1 - jnp.sum(w1, axis=0, keepdims=True)).T         # [hidden, 1]
    w2t = w2.T.astype(compute_dtype)                          # [1, hidden]
    b2s = b2.reshape(-1).astype(jnp.float32)                  # (1,) SMEM scalar

    depth_flat, dmin, dmax = run_depth_head(x, w1t, b1t, w2t, b2s, compute_dtype)

    depth_raw_batch = depth_flat.reshape(B, 1, H, W)          # unsqueeze(1)

    depth_rgb_batch = None
    if return_rgb:
        R = HW // 128
        depth_rows = depth_flat.reshape(B, R, 128)            # sublane-dense view
        dmin_s = dmin.reshape(B)
        scale_s = (255.0 / (dmax - dmin + 1e-8)).reshape(B)   # hoisted per-image divide
        rgb = run_colorize(depth_rows, dmin_s, scale_s)
        depth_rgb_batch = rgb.reshape(B, 3, H, W)

    if single_return and return_rgb and depth_rgb_batch is not None:
        return depth_rgb_batch
    elif single_return and not return_rgb:
        return depth_raw_batch
    elif not single_return:
        return depth_rgb_batch, depth_raw_batch
    else:
        raise Exception("Invalid Parameters for Depth Model")


def init_params(key, in_ch=3, hidden=32):
    k1, k2 = jax.random.split(key)
    return {
        "w1": (jax.random.normal(k1, (in_ch, hidden), jnp.float32) * 0.1),
        "b1": jnp.zeros((1, hidden), jnp.float32),
        "w2": (jax.random.normal(k2, (hidden, 1), jnp.float32) * 0.1),
        "b2": jnp.zeros((1, 1), jnp.float32),
    }


if __name__ == "__main__":
    key = jax.random.PRNGKey(0)
    k_img, k_par = jax.random.split(key)

    B, C, H, W = 2, 3, 16, 16
    images = jax.random.uniform(k_img, (B, C, H, W), jnp.float32)   # [0,1) RGB
    params = init_params(k_par, in_ch=C, hidden=32)

    out = depth_block_forward(images, params, return_rgb=True, single_return=True)
    out = jax.block_until_ready(out)

    assert out.shape == (B, 3, H, W) and out.dtype == jnp.float32
    assert bool(jnp.all(jnp.isfinite(out)))
    assert bool(jnp.all((out >= 0.0) & (out <= 255.0)))
    print("KERNEL_OK")
</pallas_src>

<mosaic_0001>
module attributes {stable_mosaic.version = 11 : i64} {
  func.func @depth_head_kernel(%arg0: i32, %arg1: i32, %arg2: memref<1x3x256xf32, #tpu.memory_space<vmem>>, %arg3: memref<32x3xf32, #tpu.memory_space<vmem>>, %arg4: memref<32x1xf32, #tpu.memory_space<vmem>>, %arg5: memref<1x32xf32, #tpu.memory_space<vmem>>, %arg6: memref<1xf32, #tpu.memory_space<smem>>, %arg7: memref<1x1x256xf32, #tpu.memory_space<vmem>>, %arg8: memref<1x1x1xf32, #tpu.memory_space<vmem>>, %arg9: memref<1x1x1xf32, #tpu.memory_space<vmem>>) attributes {dimension_semantics = [#tpu.dimension_semantics<parallel>, #tpu.dimension_semantics<arbitrary>], iteration_bounds = array<i64: 2, 1>, scalar_prefetch = 0 : i64, scratch_operands = 0 : i64, tpu.core_type = #tpu.core_type<tc>, window_params = [{transform_indices = @transform_0, window_bounds = array<i64: 1, 3, 256>}, {pipeline_mode = #tpu.pipeline_mode<synchronous>, transform_indices = @transform_1, window_bounds = array<i64: 32, 3>}, {pipeline_mode = #tpu.pipeline_mode<synchronous>, transform_indices = @transform_2, window_bounds = array<i64: 32, 1>}, {pipeline_mode = #tpu.pipeline_mode<synchronous>, transform_indices = @transform_3, window_bounds = array<i64: 1, 32>}, {transform_indices = @transform_4, window_bounds = array<i64: 1>}, {transform_indices = @transform_5, window_bounds = array<i64: 1, 1, 256>}, {transform_indices = @transform_6, window_bounds = array<i64: 1, 1, 1>}, {transform_indices = @transform_7, window_bounds = array<i64: 1, 1, 1>}]} {
    %c0 = arith.constant 0 : index
    %c0_0 = arith.constant 0 : index
    %c0_1 = arith.constant 0 : index
    %0 = vector.load %arg2[%c0, %c0_0, %c0_1] : memref<1x3x256xf32, #tpu.memory_space<vmem>>, vector<1x3x256xf32>
    %1 = vector.shape_cast %0 : vector<1x3x256xf32> to vector<3x256xf32>
    %c0_2 = arith.constant 0 : index
    %c0_3 = arith.constant 0 : index
    %2 = vector.load %arg3[%c0_2, %c0_3] : memref<32x3xf32, #tpu.memory_space<vmem>>, vector<32x3xf32>
    %cst = arith.constant dense<0.000000e+00> : vector<32x256xf32>
    %3 = tpu.matmul %2, %1, %cst {dimension_numbers = #tpu.dot_dimension_numbers<[1], [0], [0], [1], [0, 0, 1, 1], [], []>} : vector<32x3xf32>, vector<3x256xf32>, vector<32x256xf32> -> vector<32x256xf32>
    %c0_4 = arith.constant 0 : index
    %c0_5 = arith.constant 0 : index
    %4 = vector.load %arg4[%c0_4, %c0_5] : memref<32x1xf32, #tpu.memory_space<vmem>>, vector<32x1xf32>
    %5 = vector.broadcast %4 : vector<32x1xf32> to vector<32x256xf32>
    %6 = arith.addf %3, %5 : vector<32x256xf32>
    %cst_6 = arith.constant 5.000000e-01 : f32
    %7 = vector.broadcast %cst_6 : f32 to vector<32x256xf32>
    %8 = arith.mulf %7, %6 : vector<32x256xf32>
    %cst_7 = arith.constant 8.510000e-01 : f32
    %9 = vector.broadcast %cst_7 : f32 to vector<32x256xf32>
    %10 = arith.mulf %9, %6 : vector<32x256xf32>
    %11 = math.tanh %10 : vector<32x256xf32>
    %cst_8 = arith.constant 1.000000e+00 : f32
    %12 = vector.broadcast %cst_8 : f32 to vector<32x256xf32>
    %13 = arith.addf %12, %11 : vector<32x256xf32>
    %14 = arith.mulf %8, %13 : vector<32x256xf32>
    %c0_9 = arith.constant 0 : index
    %c0_10 = arith.constant 0 : index
    %15 = vector.load %arg5[%c0_9, %c0_10] : memref<1x32xf32, #tpu.memory_space<vmem>>, vector<1x32xf32>
    %cst_11 = arith.constant dense<0.000000e+00> : vector<1x256xf32>
    %16 = tpu.matmul %15, %14, %cst_11 {dimension_numbers = #tpu.dot_dimension_numbers<[1], [0], [0], [1], [0, 0, 1, 1], [], []>} : vector<1x32xf32>, vector<32x256xf32>, vector<1x256xf32> -> vector<1x256xf32>
    %c0_12 = arith.constant 0 : index
    %17 = memref.load %arg6[%c0_12] : memref<1xf32, #tpu.memory_space<smem>>
    %18 = vector.broadcast %17 : f32 to vector<1x256xf32>
    %19 = arith.addf %16, %18 : vector<1x256xf32>
    %c0_13 = arith.constant 0 : index
    %c0_14 = arith.constant 0 : index
    %c0_15 = arith.constant 0 : index
    %20 = vector.load %arg7[%c0_13, %c0_14, %c0_15] : memref<1x1x256xf32, #tpu.memory_space<vmem>>, vector<1x1x256xf32>
    %21 = vector.shape_cast %20 : vector<1x1x256xf32> to vector<1x256xf32>
    %22 = vector.shape_cast %19 : vector<1x256xf32> to vector<1x1x256xf32>
    tpu.vector_store %arg7[%c0_13, %c0_14, %c0_15], %22 {strides = array<i32>} : memref<1x1x256xf32, #tpu.memory_space<vmem>>, vector<1x1x256xf32>,
    %c0_i32 = arith.constant 0 : i32
    %23 = arith.cmpi eq, %arg1, %c0_i32 : i32
    %24 = arith.extui %23 : i1 to i32
    %c0_i32_16 = arith.constant 0 : i32
    %25 = arith.cmpi ne, %24, %c0_i32_16 : i32
    scf.if %25 {
      %cst_31 = arith.constant 0x7F800000 : f32
      %42 = vector.broadcast %cst_31 : f32 to vector<1x1x1xf32>
      %c0_32 = arith.constant 0 : index
      %c0_33 = arith.constant 0 : index
      %c0_34 = arith.constant 0 : index
      %43 = vector.load %arg8[%c0_32, %c0_33, %c0_34] : memref<1x1x1xf32, #tpu.memory_space<vmem>>, vector<1x1x1xf32>
      tpu.vector_store %arg8[%c0_32, %c0_33, %c0_34], %42 {strides = array<i32>} : memref<1x1x1xf32, #tpu.memory_space<vmem>>, vector<1x1x1xf32>,
      %cst_35 = arith.constant 0xFF800000 : f32
      %44 = vector.broadcast %cst_35 : f32 to vector<1x1x1xf32>
      %c0_36 = arith.constant 0 : index
      %c0_37 = arith.constant 0 : index
      %c0_38 = arith.constant 0 : index
      %45 = vector.load %arg9[%c0_36, %c0_37, %c0_38] : memref<1x1x1xf32, #tpu.memory_space<vmem>>, vector<1x1x1xf32>
      tpu.vector_store %arg9[%c0_36, %c0_37, %c0_38], %44 {strides = array<i32>} : memref<1x1x1xf32, #tpu.memory_space<vmem>>, vector<1x1x1xf32>,
    } else {
    }
    %c0_17 = arith.constant 0 : index
    %c0_18 = arith.constant 0 : index
    %c0_19 = arith.constant 0 : index
    %26 = vector.load %arg8[%c0_17, %c0_18, %c0_19] : memref<1x1x1xf32, #tpu.memory_space<vmem>>, vector<1x1x1xf32>
    %27 = vector.shape_cast %19 : vector<1x256xf32> to vector<1x1x256xf32>
    %cst_20 = arith.constant dense<0x7F800000> : vector<1xf32>
    %28 = vector.multi_reduction <minimumf>, %27, %cst_20 [1, 2] : vector<1x1x256xf32> to vector<1xf32>
    %29 = vector.shape_cast %28 : vector<1xf32> to vector<1x1x1xf32>
    %30 = vector.extract %29[0, 0, 0] : f32 from vector<1x1x1xf32>
    %31 = vector.broadcast %30 : f32 to vector<1x1x1xf32>
    %32 = arith.minimumf %26, %31 : vector<1x1x1xf32>
    %c0_21 = arith.constant 0 : index
    %c0_22 = arith.constant 0 : index
    %c0_23 = arith.constant 0 : index
    %33 = vector.load %arg8[%c0_21, %c0_22, %c0_23] : memref<1x1x1xf32, #tpu.memory_space<vmem>>, vector<1x1x1xf32>
    tpu.vector_store %arg8[%c0_21, %c0_22, %c0_23], %32 {strides = array<i32>} : memref<1x1x1xf32, #tpu.memory_space<vmem>>, vector<1x1x1xf32>,
    %c0_24 = arith.constant 0 : index
    %c0_25 = arith.constant 0 : index
    %c0_26 = arith.constant 0 : index
    %34 = vector.load %arg9[%c0_24, %c0_25, %c0_26] : memref<1x1x1xf32, #tpu.memory_space<vmem>>, vector<1x1x1xf32>
    %35 = vector.shape_cast %19 : vector<1x256xf32> to vector<1x1x256xf32>
    %cst_27 = arith.constant dense<0xFF800000> : vector<1xf32>
    %36 = vector.multi_reduction <maximumf>, %35, %cst_27 [1, 2] : vector<1x1x256xf32> to vector<1xf32>
    %37 = vector.shape_cast %36 : vector<1xf32> to vector<1x1x1xf32>
    %38 = vector.extract %37[0, 0, 0] : f32 from vector<1x1x1xf32>
    %39 = vector.broadcast %38 : f32 to vector<1x1x1xf32>
    %40 = arith.maximumf %34, %39 : vector<1x1x1xf32>
    %c0_28 = arith.constant 0 : index
    %c0_29 = arith.constant 0 : index
    %c0_30 = arith.constant 0 : index
    %41 = vector.load %arg9[%c0_28, %c0_29, %c0_30] : memref<1x1x1xf32, #tpu.memory_space<vmem>>, vector<1x1x1xf32>
    tpu.vector_store %arg9[%c0_28, %c0_29, %c0_30], %40 {strides = array<i32>} : memref<1x1x1xf32, #tpu.memory_space<vmem>>, vector<1x1x1xf32>,
    return
  }
  func.func @transform_0(%arg0: i32, %arg1: i32) -> (i32, i32, i32) {
    %c0_i32 = arith.constant 0 : i32
    %c0_i32_0 = arith.constant 0 : i32
    return %arg0, %c0_i32, %arg1 : i32, i32, i32
  }
  func.func @transform_1(%arg0: i32, %arg1: i32) -> (i32, i32) {
    %c0_i32 = arith.constant 0 : i32
    %c0_i32_0 = arith.constant 0 : i32
    %c0_i32_1 = arith.constant 0 : i32
    return %c0_i32, %c0_i32_0 : i32, i32
  }
  func.func @transform_2(%arg0: i32, %arg1: i32) -> (i32, i32) {
    %c0_i32 = arith.constant 0 : i32
    %c0_i32_0 = arith.constant 0 : i32
    %c0_i32_1 = arith.constant 0 : i32
    return %c0_i32, %c0_i32_0 : i32, i32
  }
  func.func @transform_3(%arg0: i32, %arg1: i32) -> (i32, i32) {
    %c0_i32 = arith.constant 0 : i32
    %c0_i32_0 = arith.constant 0 : i32
    %c0_i32_1 = arith.constant 0 : i32
    return %c0_i32, %c0_i32_0 : i32, i32
  }
  func.func @transform_4(%arg0: i32, %arg1: i32) -> i32 {
    %c0_i32 = arith.constant 0 : i32
    %c0_i32_0 = arith.constant 0 : i32
    return %c0_i32 : i32
  }
  func.func @transform_5(%arg0: i32, %arg1: i32) -> (i32, i32, i32) {
    %c0_i32 = arith.constant 0 : i32
    %c0_i32_0 = arith.constant 0 : i32
    return %arg0, %c0_i32, %arg1 : i32, i32, i32
  }
  func.func @transform_6(%arg0: i32, %arg1: i32) -> (i32, i32, i32) {
    %c0_i32 = arith.constant 0 : i32
    %c0_i32_0 = arith.constant 0 : i32
    %c0_i32_1 = arith.constant 0 : i32
    return %arg0, %c0_i32, %c0_i32_0 : i32, i32, i32
  }
  func.func @transform_7(%arg0: i32, %arg1: i32) -> (i32, i32, i32) {
    %c0_i32 = arith.constant 0 : i32
    %c0_i32_0 = arith.constant 0 : i32
    %c0_i32_1 = arith.constant 0 : i32
    return %arg0, %c0_i32, %c0_i32_0 : i32, i32, i32
  }
}

</mosaic_0001>

<llo_original>
// kernel: tpu_custom_call.1
$region0: #{tpu_custom_call.1}
  #allocation0 [shape = 'u32[]', space=smem, size = 0x4, offset = 0x4, fixed_abs, tag = 'smem constant byte address 0x4 - core index']
  #allocation1 [shape = 'u32[144,128]{1,0:T(1,128)}', space=vmem, size = 0x12000, scoped, tag = 'internal scratch']
  #allocation2 [shape = 'f32[1]{0:T(128)S(6)}', space=smem, size = 0x200, scoped, tag = 'scoped memory for tpu_custom_call.1']
  %s0 = inlined_call_operand.vmem [shape: f32[2,3,256], index: 0, kind: input, shape index: {}]
  %s1 = inlined_call_operand.vmem [shape: f32[32,3], index: 1, kind: input, shape index: {}]
  %s2 = inlined_call_operand.vmem [shape: f32[32,1], index: 2, kind: input, shape index: {}]
  %s3 = inlined_call_operand.vmem [shape: f32[1,32], index: 3, kind: input, shape index: {}]
  %s4 = inlined_call_operand.<no memory space> [shape: f32[1], index: 4, kind: input, shape index: {}]
  %s5 = inlined_call_operand.hbm [shape: f32[2,1,256], index: 5, kind: output, shape index: {0}]
  %s6 = inlined_call_operand.vmem [shape: f32[2,1,1], index: 6, kind: output, shape index: {1}]
  %s7 = inlined_call_operand.vmem [shape: f32[2,1,1], index: 7, kind: output, shape index: {2}]
  %8 = xla_tuple %s5, %s6, %s7
  %s9 = sld [smem:[#allocation0]]
  $region73: #{tpu_custom_call.1} parent=0
    _
  %s11 = ssub.s32 1, %s9
  %s12 = scalar_select 0, %s11, %s9
  %13 = sst [smem:[#allocation2]] %s4
  $region1: #{tpu_custom_call.1} parent=0
    #allocation3 [shape = 'u8[2048]{0}', space=vmem, size = 0x800, scoped, tag = 'output window, operand 0']
    #allocation4 [shape = 's32[2]{0}', space=sflag, size = 0x8, scoped, tag = 'scoped memory for tpu_custom_call.1']
    %14 = vsyncpa [#allocation4], 0
    %s15 = scalar_lea.sflag [#allocation4], 1
    %16 = vsyncpa %s15, 0
    loop: start=0, step=1, limit=4
    $region2: #{tpu_custom_call.1} parent=1 // loop_pre_header
      _
    $region3: #{tpu_custom_call.1} parent=1 // loop_header
      %s18 = sphi 0, %s22
      %p19 = scmp.ge.s32.totalorder %s18, 4
      %s25 = sphi 0, %s37
      %s26 = sphi 0, %s33
      %s27 = sphi 0, %s25
      %s28 = sphi 0, %s26
      %s29 = sphi 0, %s27
      %s30 = sphi 0, %s28
      %s42 = sphi 0, %s44
      %s45 = sphi 0, %s42
      %s46 = sphi 0, %s45
      %s62 = sphi 0, %s46
      %s66 = sphi 0, %s66
      %s68 = sphi 0, %s66
      %s69 = sphi 0, %s68
      %s83 = sphi 0, %s69
      %s87 = sphi 0, %s87
      %s89 = sphi 0, %s87
      %s90 = sphi 0, %s89
      %s104 = sphi 0, %s90
      %s108 = sphi 0, %s108
      %s110 = sphi 0, %s108
      %s111 = sphi 0, %s110
      %s125 = sphi 0, %s111
      %s129 = sphi 0, %s129
      %s131 = sphi 0, %s129
      %s132 = sphi 0, %s131
      %s146 = sphi 0, %s132
      %s154 = sphi 0, %s156
      %s157 = sphi 0, %s154
      %s158 = sphi 0, %s157
      %s174 = sphi 0, %s158
      %s180 = sphi 0, %s182
      %s183 = sphi 0, %s180
      %s184 = sphi 0, %s183
      %s200 = sphi 0, %s184
      %s206 = sphi 0, %s208
      %s209 = sphi 0, %s206
      %s210 = sphi 0, %s209
      %s226 = sphi 0, %s210
    $region4: #{tpu_custom_call.1} parent=1 // loop_header_branch
      %21 = sbr.rel (%p19) target = $region8
    $region5: #{tpu_custom_call.1} parent=1 // loop_body
      %s23 = ssub.s32 %s18, 1
      %s24 = ssub.s32 %s18, 2
      %s31 = sadd.s32 1, %s26
      %p32 = scmp.ge.s32.totalorder %s31, 1
      %s33 = scalar_select %p32, 0, %s31
      %s34 = sadd.s32 1, %s25
      %s35 = scalar_select %p32, %s34, %s25
      %p36 = scmp.ge.s32.totalorder %s35, 2
      %s37 = scalar_select %p36, 0, %s35
      %s38 = ssub.s32 %s25, %s37
      %s39 = ssub.s32 %s26, %s33
      %s40 = sor.u32 %s38, %s39
      %p41 = scmp.eq.s32.totalorder %s40, 0
      %s43 = sadd.s32 %s42, 1
      %s44 = scalar_select %p41, %s42, %s43
      %p47 = pneg %p41
      %p48 = scmp.eq.s32.totalorder %s18, 1
      %p49 = por %p47, %p48
      %p50 = scmp.ne.s32.totalorder %s42, %s45
      %p51 = scmp.eq.s32.totalorder %s18, 0
      %p52 = por %p50, %p51
      %p53 = scmp.ne.s32.totalorder %s42, %s45
      %p54 = scmp.eq.s32.totalorder %s23, 1
      %p55 = por %p53, %p54
      %p56 = scmp.ne.s32.totalorder %s45, %s46
      %p57 = scmp.eq.s32.totalorder %s23, 0
      %p58 = por %p56, %p57
      %p59 = scmp.ne.s32.totalorder %s45, %s46
      %p60 = scmp.eq.s32.totalorder %s24, 1
      %p61 = por %p59, %p60
      %p63 = scmp.ne.s32.totalorder %s46, %s62
      %p64 = scmp.eq.s32.totalorder %s24, 0
      %p65 = por %p63, %p64
      %s67 = sadd.s32 %s66, 1
      %p70 = scmp.eq.s32.totalorder %s18, 1
      %p71 = scmp.ne.s32.totalorder %s66, %s68
      %p72 = scmp.eq.s32.totalorder %s18, 0
      %p73 = por %p71, %p72
      %p74 = scmp.ne.s32.totalorder %s66, %s68
      %p75 = scmp.eq.s32.totalorder %s23, 1
      %p76 = por %p74, %p75
      %p77 = scmp.ne.s32.totalorder %s68, %s69
      %p78 = scmp.eq.s32.totalorder %s23, 0
      %p79 = por %p77, %p78
      %p80 = scmp.ne.s32.totalorder %s68, %s69
      %p81 = scmp.eq.s32.totalorder %s24, 1
      %p82 = por %p80, %p81
      %p84 = scmp.ne.s32.totalorder %s69, %s83
      %p85 = scmp.eq.s32.totalorder %s24, 0
      %p86 = por %p84, %p85
      %s88 = sadd.s32 %s87, 1
      %p91 = scmp.eq.s32.totalorder %s18, 1
      %p92 = scmp.ne.s32.totalorder %s87, %s89
      %p93 = scmp.eq.s32.totalorder %s18, 0
      %p94 = por %p92, %p93
      %p95 = scmp.ne.s32.totalorder %s87, %s89
      %p96 = scmp.eq.s32.totalorder %s23, 1
      %p97 = por %p95, %p96
      %p98 = scmp.ne.s32.totalorder %s89, %s90
      %p99 = scmp.eq.s32.totalorder %s23, 0
      %p100 = por %p98, %p99
      %p101 = scmp.ne.s32.totalorder %s89, %s90
      %p102 = scmp.eq.s32.totalorder %s24, 1
      %p103 = por %p101, %p102
      %p105 = scmp.ne.s32.totalorder %s90, %s104
      %p106 = scmp.eq.s32.totalorder %s24, 0
      %p107 = por %p105, %p106
      %s109 = sadd.s32 %s108, 1
      %p112 = scmp.eq.s32.totalorder %s18, 1
      %p113 = scmp.ne.s32.totalorder %s108, %s110
      %p114 = scmp.eq.s32.totalorder %s18, 0
      %p115 = por %p113, %p114
      %p116 = scmp.ne.s32.totalorder %s108, %s110
      %p117 = scmp.eq.s32.totalorder %s23, 1
      %p118 = por %p116, %p117
      %p119 = scmp.ne.s32.totalorder %s110, %s111
      %p120 = scmp.eq.s32.totalorder %s23, 0
      %p121 = por %p119, %p120
      %p122 = scmp.ne.s32.totalorder %s110, %s111
      %p123 = scmp.eq.s32.totalorder %s24, 1
      %p124 = por %p122, %p123
      %p126 = scmp.ne.s32.totalorder %s111, %s125
      %p127 = scmp.eq.s32.totalorder %s24, 0
      %p128 = por %p126, %p127
      %s130 = sadd.s32 %s129, 1
      %p133 = scmp.eq.s32.totalorder %s18, 1
      %p134 = scmp.ne.s32.totalorder %s129, %s131
      %p135 = scmp.eq.s32.totalorder %s18, 0
      %p136 = por %p134, %p135
      %p137 = scmp.ne.s32.totalorder %s129, %s131
      %p138 = scmp.eq.s32.totalorder %s23, 1
      %p139 = por %p137, %p138
      %p140 = scmp.ne.s32.totalorder %s131, %s132
      %p141 = scmp.eq.s32.totalorder %s23, 0
      %p142 = por %p140, %p141
      %p143 = scmp.ne.s32.totalorder %s131, %s132
      %p144 = scmp.eq.s32.totalorder %s24, 1
      %p145 = por %p143, %p144
      %p147 = scmp.ne.s32.totalorder %s132, %s146
      %p148 = scmp.eq.s32.totalorder %s24, 0
      %p149 = por %p147, %p148
      %s150 = ssub.s32 %s25, %s37
      %s151 = ssub.s32 %s26, %s33
      %s152 = sor.u32 %s150, %s151
      %p153 = scmp.eq.s32.totalorder %s152, 0
      %s155 = sadd.s32 %s154, 1
      %s156 = scalar_select %p153, %s154, %s155
      %p159 = pneg %p153
      %p160 = scmp.eq.s32.totalorder %s18, 1
      %p161 = por %p159, %p160
      %p162 = scmp.ne.s32.totalorder %s154, %s157
      %p163 = scmp.eq.s32.totalorder %s18, 0
      %p164 = por %p162, %p163
      %p165 = scmp.ne.s32.totalorder %s154, %s157
      %p166 = scmp.eq.s32.totalorder %s23, 1
      %p167 = por %p165, %p166
      %p168 = scmp.ne.s32.totalorder %s157, %s158
      %p169 = scmp.eq.s32.totalorder %s23, 0
      %p170 = por %p168, %p169
      %p171 = scmp.ne.s32.totalorder %s157, %s158
      %p172 = scmp.eq.s32.totalorder %s24, 1
      %p173 = por %p171, %p172
      %p175 = scmp.ne.s32.totalorder %s158, %s174
      %p176 = scmp.eq.s32.totalorder %s24, 0
      %p177 = por %p175, %p176
      %s178 = ssub.s32 %s25, %s37
      %p179 = scmp.eq.s32.totalorder %s178, 0
      %s181 = sadd.s32 %s180, 1
      %s182 = scalar_select %p179, %s180, %s181
      %p185 = pneg %p179
      %p186 = scmp.eq.s32.totalorder %s18, 1
      %p187 = por %p185, %p186
      %p188 = scmp.ne.s32.totalorder %s180, %s183
      %p189 = scmp.eq.s32.totalorder %s18, 0
      %p190 = por %p188, %p189
      %p191 = scmp.ne.s32.totalorder %s180, %s183
      %p192 = scmp.eq.s32.totalorder %s23, 1
      %p193 = por %p191, %p192
      %p194 = scmp.ne.s32.totalorder %s183, %s184
      %p195 = scmp.eq.s32.totalorder %s23, 0
      %p196 = por %p194, %p195
      %p197 = scmp.ne.s32.totalorder %s183, %s184
      %p198 = scmp.eq.s32.totalorder %s24, 1
      %p199 = por %p197, %p198
      %p201 = scmp.ne.s32.totalorder %s184, %s200
      %p202 = scmp.eq.s32.totalorder %s24, 0
      %p203 = por %p201, %p202
      %s204 = ssub.s32 %s25, %s37
      %p205 = scmp.eq.s32.totalorder %s204, 0
      %s207 = sadd.s32 %s206, 1
      %s208 = scalar_select %p205, %s206, %s207
      %p211 = pneg %p205
      %p212 = scmp.eq.s32.totalorder %s18, 1
      %p213 = por %p211, %p212
      %p214 = scmp.ne.s32.totalorder %s206, %s209
      %p215 = scmp.eq.s32.totalorder %s18, 0
      %p216 = por %p214, %p215
      %p217 = scmp.ne.s32.totalorder %s206, %s209
      %p218 = scmp.eq.s32.totalorder %s23, 1
      %p219 = por %p217, %p218
      %p220 = scmp.ne.s32.totalorder %s209, %s210
      %p221 = scmp.eq.s32.totalorder %s23, 0
      %p222 = por %p220, %p221
      %p223 = scmp.ne.s32.totalorder %s209, %s210
      %p224 = scmp.eq.s32.totalorder %s24, 1
      %p225 = por %p223, %p224
      %p227 = scmp.ne.s32.totalorder %s210, %s226
      %p228 = scmp.eq.s32.totalorder %s24, 0
      %p229 = por %p227, %p228
      %p230 = scmp.le.s32.totalorder 1, %s18
      %p231 = scmp.lt.s32.totalorder %s18, 3
      %p232 = pnand %p230, %p231
      %p233 = pneg %p232
      // Predicated region
      $region9: #{tpu_custom_call.1} parent=5 // pred_check
        _
      $region10: #{tpu_custom_call.1} parent=5 // pred_check_branch
        %235 = sbr.rel (%p232) target = $region12
      $region11: #{tpu_custom_call.1} parent=5 // pred_region
        %s236 = ssub.s32 %s18, 1
        // Predicated region
        $region13: #{tpu_custom_call.1} parent=11 // pred_check
          %p237 = pneg %p79
        $region14: #{tpu_custom_call.1} parent=11 // pred_check_branch
          %239 = sbr.rel (%p237) target = $region16
        $region15: #{tpu_custom_call.1} parent=11 // pred_region
          _
        $region16: #{tpu_custom_call.1} parent=11 // pred_fallthru
          _
        // Predicated region
        $region17: #{tpu_custom_call.1} parent=11 // pred_check
          %p240 = pneg %p100
        $region18: #{tpu_custom_call.1} parent=11 // pred_check_branch
          %242 = sbr.rel (%p240) target = $region20
        $region19: #{tpu_custom_call.1} parent=11 // pred_region
          _
        $region20: #{tpu_custom_call.1} parent=11 // pred_fallthru
          _
        // Predicated region
        $region21: #{tpu_custom_call.1} parent=11 // pred_check
          %p243 = pneg %p121
        $region22: #{tpu_custom_call.1} parent=11 // pred_check_branch
          %245 = sbr.rel (%p243) target = $region24
        $region23: #{tpu_custom_call.1} parent=11 // pred_region
          _
        $region24: #{tpu_custom_call.1} parent=11 // pred_fallthru
          _
        // Predicated region
        $region25: #{tpu_custom_call.1} parent=11 // pred_check
          %p246 = pneg %p142
        $region26: #{tpu_custom_call.1} parent=11 // pred_check_branch
          %248 = sbr.rel (%p246) target = $region28
        $region27: #{tpu_custom_call.1} parent=11 // pred_region
          _
        $region28: #{tpu_custom_call.1} parent=11 // pred_fallthru
          _
      $region12: #{tpu_custom_call.1} parent=5 // pred_fallthru
        _
      %p249 = scmp.lt.s32.totalorder %s18, 2
      // Predicated region
      $region29: #{tpu_custom_call.1} parent=5 // pred_check
        %p250 = pneg %p249
      $region30: #{tpu_custom_call.1} parent=5 // pred_check_branch
        %252 = sbr.rel (%p250) target = $region32
      $region31: #{tpu_custom_call.1} parent=5 // pred_region
        // Predicated region
        $region33: #{tpu_custom_call.1} parent=31 // pred_check
          %p253 = pneg %p52
        $region34: #{tpu_custom_call.1} parent=31 // pred_check_branch
          %255 = sbr.rel (%p253) target = $region36
        $region35: #{tpu_custom_call.1} parent=31 // pred_region
          %s256 = smul.u32 2, %s26
          %p257 = scmp.lt.s32.totalorder %s25, 1
          %s258 = scalar_select %p257, %s25, 1
          %p259 = scmp.lt.s32.totalorder %s256, 1
          %s260 = scalar_select %p259, %s256, 1
          %s261 = smul.addr %s258, 2
          %s262 = sadd.s32 %s260, %s261
          %s263 = smul.addr %s262, 4
          %s264 = scalar_lea.vmem %s0, %s263
          %s265 = smul.u32 2, %s26
        $region36: #{tpu_custom_call.1} parent=31 // pred_fallthru
          _
      $region32: #{tpu_custom_call.1} parent=5 // pred_fallthru
        _
      %p266 = scmp.le.s32.totalorder 1, %s18
      %p267 = scmp.lt.s32.totalorder %s18, 3
      %p268 = pnand %p266, %p267
      %p269 = pneg %p268
      // Predicated region
      $region37: #{tpu_custom_call.1} parent=5 // pred_check
        _
      $region38: #{tpu_custom_call.1} parent=5 // pred_check_branch
        %271 = sbr.rel (%p268) target = $region40
      $region39: #{tpu_custom_call.1} parent=5 // pred_region
        %s272 = ssub.s32 %s18, 1
        %s273 = smul.u32 2, %s28
        %p274 = scmp.lt.s32.totalorder %s27, 1
        %s275 = scalar_select %p274, %s27, 1
        %p276 = scmp.lt.s32.totalorder %s273, 1
        %s277 = scalar_select %p276, %s273, 1
        %s278 = smul.addr %s275, 2
        %s279 = sadd.s32 %s277, %s278
        %s280 = smul.addr %s279, 4
        %s281 = scalar_lea.vmem %s0, %s280
        %p282 = pneg %p58
        %p283 = pneg %p55
        %p284 = pneg %p79
        %p285 = pneg %p76
        %p286 = pneg %p100
        %p287 = pneg %p97
        %p288 = pneg %p121
        %p289 = pneg %p118
        %p290 = pneg %p142
        %p291 = pneg %p139
        %p292 = pneg %p170
        %p293 = pneg %p167
        %s294 = sand.u32 %s157, 1
        %s295 = scalar_lea.sflag [#allocation4], %s294
        %s296 = sand.u32 %s157, 1
        %s297 = smul.addr %s296, 2
        %s298 = scalar_lea.vmem [#allocation3], %s297
        %p299 = pneg %p196
        %p300 = pneg %p193
        %p301 = scmp.lt.s32.totalorder %s27, 1
        %s302 = scalar_select %p301, %s27, 1
        %s303 = scalar_lea.vmem %s6, %s302
        %p304 = pneg %p222
        %p305 = pneg %p219
        %p306 = scmp.lt.s32.totalorder %s27, 1
        %s307 = scalar_select %p306, %s27, 1
        %s308 = scalar_lea.vmem %s7, %s307
        %s309 = smul.u32 2, %s28
        %p310 = scmp.lt.s32.totalorder %s27, 1
        %s311 = scalar_select %p310, %s27, 1
        %p312 = scmp.lt.s32.totalorder %s309, 1
        %s313 = scalar_select %p312, %s309, 1
        %s314 = smul.addr %s311, 2
        %s315 = sadd.s32 %s313, %s314
        %s316 = smul.addr %s315, 4
        %s317 = scalar_lea.vmem %s0, %s316
        %s318 = smul.u32 2, %s28
        %s319 = smul.u32 2, %s28
        %p320 = scmp.lt.s32.totalorder %s27, 1
        %s321 = scalar_select %p320, %s27, 1
        %s322 = scalar_lea.vmem %s6, %s321
        %p323 = scmp.lt.s32.totalorder %s27, 1
        %s324 = scalar_select %p323, %s27, 1
        %s325 = scalar_lea.vmem %s7, %s324
        %v326 = vld [vmem:[%s317] sm:$0x77]
        %v327 = vld [vmem:[%s1] sm:$0xff]
        %v328 = vld [vmem:[%s1 + $0x8] sm:$0xff]
        %v329 = vld [vmem:[%s1 + $0x10] sm:$0xff]
        %v330 = vld [vmem:[%s1 + $0x18] sm:$0xff]
        %v331 = vld [vmem:[%s2] sm:$0xff]
        %v332 = vld [vmem:[%s2 + $0x8] sm:$0xff]
        %v333 = vld [vmem:[%s2 + $0x10] sm:$0xff]
        %v334 = vld [vmem:[%s2 + $0x18] sm:$0xff]
        %336 = vset.pattern.permute.xlu0 0
        %337 = vperm.xlu0 %336, %v331
        %v338 = vpop.permute.xlu0 %337
        %341 = vset.pattern.permute.xlu0 0
        %342 = vperm.xlu0 %341, %v332
        %v343 = vpop.permute.xlu0 %342
        %346 = vset.pattern.permute.xlu0 0
        %347 = vperm.xlu0 %346, %v333
        %v348 = vpop.permute.xlu0 %347
        %351 = vset.pattern.permute.xlu0 0
        %352 = vperm.xlu0 %351, %v334
        %v353 = vpop.permute.xlu0 %352
        %v356 = vcombine.high %v326, %v326
        %vm357 = vcmask 23552
        %v359 = vsel %vm357, %v327, 0
        %v362 = vsel %vm357, %v328, 0
        %v365 = vsel %vm357, %v329, 0
        %v368 = vsel %vm357, %v330, 0
        %vm370 = vcmask 1042432
        %v371 = vsel %vm370, %v326, 0
        %v373 = vsel %vm370, %v356, 0
        %375 = vmatprep.subr.mxu0 0.0
        %376 = vmatpush1.msra.mxu0 0.0
        %377 = vmatprep.subr.mxu0 0.0
        %378 = vmatpush1.msra.mxu0 0.0
        %379 = vmatprep.subr.mxu0 0.0
        %380 = vmatpush1.msra.mxu0 0.0
        %381 = vmatprep.subr.mxu0 0.0
        %382 = vmatpush1.msra.mxu0 0.0
        %383 = vmatprep.subr.mxu0 0.0
        %384 = vmatpush1.msra.mxu0 0.0
        %385 = vmatprep.subr.mxu0 0.0
        %386 = vmatpush1.msra.mxu0 0.0
        %387 = vmatprep.subr.mxu0 0.0
        %388 = vmatpush1.msra.mxu0 0.0
        %389 = vmatprep.subr.mxu0 0.0
        %390 = vmatpush1.msra.mxu0 0.0
        %391 = vmatprep.subr.mxu0 0.0
        %392 = vmatpush1.msra.mxu0 0.0
        %393 = vmatprep.subr.mxu0 0.0
        %394 = vmatpush1.msra.mxu0 0.0
        %395 = vmatprep.subr.mxu0 0.0
        %396 = vmatpush1.msra.mxu0 0.0
        %397 = vmatprep.subr.mxu0 0.0
        %398 = vmatpush1.msra.mxu0 0.0
        %399 = vmatprep.subr.mxu0 0.0
        %400 = vmatpush1.msra.mxu0 0.0
        %401 = vmatprep.subr.mxu0 0.0
        %402 = vmatpush1.msra.mxu0 0.0
        %403 = vmatprep.subr.mxu0 0.0
        %404 = vmatpush1.msra.mxu0 0.0
        %405 = vmatprep.subr.mxu0 %v373
        %406 = vmatpush1.msra.mxu0 %v371
        %407 = vmatprep.subr.mxu0 0.0
        %408 = vmatpush2.msra.mxu0 0.0
        %409 = vmatprep.subr.mxu0 0.0
        %410 = vmatpush2.msra.mxu0 0.0
        %411 = vmatprep.subr.mxu0 0.0
        %412 = vmatpush2.msra.mxu0 0.0
        %413 = vmatprep.subr.mxu0 0.0
        %414 = vmatpush2.msra.mxu0 0.0
        %415 = vmatprep.subr.mxu0 0.0
        %416 = vmatpush2.msra.mxu0 0.0
        %417 = vmatprep.subr.mxu0 0.0
        %418 = vmatpush2.msra.mxu0 0.0
        %419 = vmatprep.subr.mxu0 0.0
        %420 = vmatpush2.msra.mxu0 0.0
        %421 = vmatprep.subr.mxu0 0.0
        %422 = vmatpush2.msra.mxu0 0.0
        %423 = vmatprep.subr.mxu0 0.0
        %424 = vmatpush2.msra.mxu0 0.0
        %425 = vmatprep.subr.mxu0 0.0
        %426 = vmatpush2.msra.mxu0 0.0
        %427 = vmatprep.subr.mxu0 0.0
        %428 = vmatpush2.msra.mxu0 0.0
        %429 = vmatprep.subr.mxu0 0.0
        %430 = vmatpush2.msra.mxu0 0.0
        %431 = vmatprep.subr.mxu0 0.0
        %432 = vmatpush2.msra.mxu0 0.0
        %433 = vmatprep.subr.mxu0 0.0
        %434 = vmatpush2.msra.mxu0 0.0
        %435 = vmatprep.subr.mxu0 0.0
        %436 = vmatpush2.msra.mxu0 0.0
        %437 = vmatprep.subr.mxu0 0.0
        %438 = vmatpush2.msra.mxu0 0.0
        %439 = vmatprep.mubr.f32.mxu0 0.0
        %440 = vmatmul.mubr.f32.gmra.mxu0 %v359
        %v441 = vpop.f32.mrf.mxu0
        %v442 = vadd.f32 %v338, %v441
        %v443 = vpop.f32.mrf.mxu0
        %v444 = vadd.f32 %v338, %v443
        %445 = vmatprep.mubr.f32.mxu0 0.0
        %446 = vmatmul.mubr.f32.gmra.mxu0 %v362
        %v447 = vpop.f32.mrf.mxu0
        %v448 = vadd.f32 %v343, %v447
        %v449 = vpop.f32.mrf.mxu0
        %v450 = vadd.f32 %v343, %v449
        %451 = vmatprep.mubr.f32.mxu0 0.0
        %452 = vmatmul.mubr.f32.gmra.mxu0 %v365
        %v453 = vpop.f32.mrf.mxu0
        %v454 = vadd.f32 %v348, %v453
        %v455 = vpop.f32.mrf.mxu0
        %v456 = vadd.f32 %v348, %v455
        %457 = vmatprep.mubr.f32.mxu0 0.0
        %458 = vmatmul.mubr.f32.gmra.mxu0 %v368
        %v459 = vpop.f32.mrf.mxu0
        %v460 = vadd.f32 %v353, %v459
        %v461 = vpop.f32.mrf.mxu0
        %v462 = vadd.f32 %v353, %v461
        %463 = vdwg.mxu0
        %v464 = vmul.f32 %v442, 0.5
        %v465 = vmul.f32 %v444, 0.5
        %v466 = vmul.f32 %v448, 0.5
        %v467 = vmul.f32 %v450, 0.5
        %v468 = vmul.f32 %v454, 0.5
        %v469 = vmul.f32 %v456, 0.5
        %v470 = vmul.f32 %v460, 0.5
        %v471 = vmul.f32 %v462, 0.5
        %v472 = vmul.f32 %v442, 0.851
        %v473 = vmul.f32 %v444, 0.851
        %v474 = vmul.f32 %v448, 0.851
        %v475 = vmul.f32 %v450, 0.851
        %v476 = vmul.f32 %v454, 0.851
        %v477 = vmul.f32 %v456, 0.851
        %v478 = vmul.f32 %v460, 0.851
        %v479 = vmul.f32 %v462, 0.851
        %v480 = vtanh.pop %v472
        %v481 = vtanh.pop %v473
        %v482 = vtanh.pop %v474
        %v483 = vtanh.pop %v475
        %v484 = vtanh.pop %v476
        %v485 = vtanh.pop %v477
        %v486 = vtanh.pop %v478
        %v487 = vtanh.pop %v479
        %v488 = vadd.f32 %v480, 1.0
        %v489 = vadd.f32 %v481, 1.0
        %v490 = vadd.f32 %v482, 1.0
        %v491 = vadd.f32 %v483, 1.0
        %v492 = vadd.f32 %v484, 1.0
        %v493 = vadd.f32 %v485, 1.0
        %v494 = vadd.f32 %v486, 1.0
        %v495 = vadd.f32 %v487, 1.0
        %v496 = vmul.f32 %v464, %v488
        %v497 = vmul.f32 %v465, %v489
        %v498 = vmul.f32 %v466, %v490
        %v499 = vmul.f32 %v467, %v491
        %v500 = vmul.f32 %v468, %v492
        %v501 = vmul.f32 %v469, %v493
        %v502 = vmul.f32 %v470, %v494
        %v503 = vmul.f32 %v471, %v495
        %v504 = vld [vmem:[%s3] sm:$0x1]
        %s505 = sld [smem:[#allocation2]]
        %v506 = vstv %s505
        %vm507 = vcmask 261120
        %v509 = vsel %vm507, %v504, 0
        %511 = vmatprep.subr.mxu0 0.0
        %512 = vmatpush1.msra.mxu0 0.0
        %513 = vmatprep.subr.mxu0 0.0
        %514 = vmatpush1.msra.mxu0 0.0
        %515 = vmatprep.subr.mxu0 0.0
        %516 = vmatpush1.msra.mxu0 0.0
        %517 = vmatprep.subr.mxu0 0.0
        %518 = vmatpush1.msra.mxu0 0.0
        %519 = vmatprep.subr.mxu0 0.0
        %520 = vmatpush1.msra.mxu0 0.0
        %521 = vmatprep.subr.mxu0 0.0
        %522 = vmatpush1.msra.mxu0 0.0
        %523 = vmatprep.subr.mxu0 0.0
        %524 = vmatpush1.msra.mxu0 0.0
        %525 = vmatprep.subr.mxu0 0.0
        %526 = vmatpush1.msra.mxu0 0.0
        %527 = vmatprep.subr.mxu0 0.0
        %528 = vmatpush1.msra.mxu0 0.0
        %529 = vmatprep.subr.mxu0 0.0
        %530 = vmatpush1.msra.mxu0 0.0
        %531 = vmatprep.subr.mxu0 0.0
        %532 = vmatpush1.msra.mxu0 0.0
        %533 = vmatprep.subr.mxu0 0.0
        %534 = vmatpush1.msra.mxu0 0.0
        %535 = vmatprep.subr.mxu0 %v503
        %536 = vmatpush1.msra.mxu0 %v502
        %537 = vmatprep.subr.mxu0 %v501
        %538 = vmatpush1.msra.mxu0 %v500
        %539 = vmatprep.subr.mxu0 %v499
        %540 = vmatpush1.msra.mxu0 %v498
        %541 = vmatprep.subr.mxu0 %v497
        %542 = vmatpush1.msra.mxu0 %v496
        %543 = vmatprep.subr.mxu0 0.0
        %544 = vmatpush2.msra.mxu0 0.0
        %545 = vmatprep.subr.mxu0 0.0
        %546 = vmatpush2.msra.mxu0 0.0
        %547 = vmatprep.subr.mxu0 0.0
        %548 = vmatpush2.msra.mxu0 0.0
        %549 = vmatprep.subr.mxu0 0.0
        %550 = vmatpush2.msra.mxu0 0.0
        %551 = vmatprep.subr.mxu0 0.0
        %552 = vmatpush2.msra.mxu0 0.0
        %553 = vmatprep.subr.mxu0 0.0
        %554 = vmatpush2.msra.mxu0 0.0
        %555 = vmatprep.subr.mxu0 0.0
        %556 = vmatpush2.msra.mxu0 0.0
        %557 = vmatprep.subr.mxu0 0.0
        %558 = vmatpush2.msra.mxu0 0.0
        %559 = vmatprep.subr.mxu0 0.0
        %560 = vmatpush2.msra.mxu0 0.0
        %561 = vmatprep.subr.mxu0 0.0
        %562 = vmatpush2.msra.mxu0 0.0
        %563 = vmatprep.subr.mxu0 0.0
        %564 = vmatpush2.msra.mxu0 0.0
        %565 = vmatprep.subr.mxu0 0.0
        %566 = vmatpush2.msra.mxu0 0.0
        %567 = vmatprep.subr.mxu0 0.0
        %568 = vmatpush2.msra.mxu0 0.0
        %569 = vmatprep.subr.mxu0 0.0
        %570 = vmatpush2.msra.mxu0 0.0
        %571 = vmatprep.subr.mxu0 0.0
        %572 = vmatpush2.msra.mxu0 0.0
        %573 = vmatprep.subr.mxu0 0.0
        %574 = vmatpush2.msra.mxu0 0.0
        %575 = vmatprep.mubr.f32.mxu0 0.0
        %576 = vmatmul.mubr.f32.gmra.mxu0 %v509
        %v577 = vpop.f32.mrf.mxu0
        %v578 = vadd.f32 %v506, %v577
        %v579 = vpop.f32.mrf.mxu0
        %v580 = vadd.f32 %v506, %v579
        %581 = vdwg.mxu0
        %v584 = vcombine.low %v578, %v580
        %v586 = vunpack.c.l.s4 1966171168
        %v587 = vunpack.c.0.s8 %v586
        %v588 = vlaneseq
        %v589 = vshrl.u32 %v588, 7
        %v590 = vsub.s32 %v587, %v589
        %v591 = vrot.slane %v584, %v590
        %v593 = vunpack.c.l.s4 1966171168
        %v594 = vunpack.c.0.s8 %v593
        %v595 = vlaneseq
        %v596 = vshrl.u32 %v595, 7
        %v597 = vsub.s32 %v594, %v596
        %v598 = vrot.slane %v591, %v597
        %v600 = vlaneseq
        %vm601 = vcmp.ge.s32.totalorder %v600, 0
        %vm602 = vcmp.lt.s32.totalorder %v600, 256
        %vm603 = vmand %vm601, %vm602
        %604 = vst.msk [vmem:[%s298] sm:$0x3] %vm603, %v598
        %p605 = scmp.eq.s32.totalorder %s28, 0
        // Predicated region
        $region41: #{tpu_custom_call.1} parent=39 // pred_check
          %p606 = pneg %p605
        $region42: #{tpu_custom_call.1} parent=39 // pred_check_branch
          %608 = sbr.rel (%p606) target = $region44
        $region43: #{tpu_custom_call.1} parent=39 // pred_region
          %vm609 = vcmask 0
          %610 = vst.msk [vmem:[%s322] sm:$0x1] %vm609, inf
          %611 = vst.msk [vmem:[%s325] sm:$0x1] %vm609, -inf
        $region44: #{tpu_custom_call.1} parent=39 // pred_fallthru
          _
        %v612 = vld [vmem:[%s322] sm:$0x1]
        %vm613 = vcmask 1040384
        %v614 = vsel %vm613, %v578, inf
        %v615 = vsel %vm613, %v580, inf
        %v616 = vmin.f32 %v614, %v615
        %617 = vmin.xlane.f32.xlu0 %v616
        %v618 = vpop.xlane.xlu0 %617
        %v619 = vrot.slane %v618, 4
        %v620 = vmin.f32 %v618, %v619
        %v621 = vrot.slane %v620, 2
        %v622 = vmin.f32 %v620, %v621
        %v623 = vrot.slane %v622, 1
        %v624 = vmin.f32 %v622, %v623
        %s625 = vtos %v624
        %v626 = vstv %s625
        %v627 = vmin.f32 %v612, %v626
        %vm628 = vcmask 0
        %629 = vst.msk [vmem:[%s322] sm:$0x1] %vm628, %v627
        %v630 = vld [vmem:[%s325] sm:$0x1]
        %v631 = vsel %vm613, %v578, -inf
        %v632 = vsel %vm613, %v580, -inf
        %v633 = vmax.f32 %v631, %v632
        %634 = vmax.xlane.f32.xlu0 %v633
        %v635 = vpop.xlane.xlu0 %634
        %v636 = vrot.slane %v635, 4
        %v637 = vmax.f32 %v635, %v636
        %v638 = vrot.slane %v637, 2
        %v639 = vmax.f32 %v637, %v638
        %v640 = vrot.slane %v639, 1
        %v641 = vmax.f32 %v639, %v640
        %s642 = vtos %v641
        %v643 = vstv %s642
        %v644 = vmax.f32 %v630, %v643
        %645 = vst.msk [vmem:[%s325] sm:$0x1] %vm628, %v644
        %s646 = sand.u32 %s157, 1
        %s647 = scalar_lea.sflag [#allocation4], %s646
        %s648 = sand.u32 %s157, 1
        %s649 = smul.addr %s648, 2
        %s650 = scalar_lea.vmem [#allocation3], %s649
        %p651 = scmp.lt.s32.totalorder %s27, 1
        %s652 = scalar_select %p651, %s27, 1
        %s653 = scalar_lea.vmem %s6, %s652
        %p654 = scmp.lt.s32.totalorder %s27, 1
        %s655 = scalar_select %p654, %s27, 1
        %s656 = scalar_lea.vmem %s7, %s655
        // Predicated region
        $region45: #{tpu_custom_call.1} parent=39 // pred_check
          %p657 = pneg %p167
        $region46: #{tpu_custom_call.1} parent=39 // pred_check_branch
          %659 = sbr.rel (%p657) target = $region48
        $region47: #{tpu_custom_call.1} parent=39 // pred_region
          %s660 = smul.u32 2, %s28
          %s662 = ssub.s32 32, 32
          %663 = vsyncadd %s647, %s662
          %s664 = smul.addr %s27, 2
          %s665 = sadd.s32 %s660, %s664
          %s666 = smul.addr %s665, 16
          %s667 = scalar_lea.hbm %s5, %s666
          %s669 = sshll.u32 %s650, 4
          %s670 = int_to_ptr.vmem [resolvable:$true] %s669
          %672 = dma.vmem_to_hbm [thread:$0]  %s670, 32, %s667, %s647
        $region48: #{tpu_custom_call.1} parent=39 // pred_fallthru
          _
        // Predicated region
        $region49: #{tpu_custom_call.1} parent=39 // pred_check
          %p673 = pneg %p193
        $region50: #{tpu_custom_call.1} parent=39 // pred_check_branch
          %675 = sbr.rel (%p673) target = $region52
        $region51: #{tpu_custom_call.1} parent=39 // pred_region
          _
        $region52: #{tpu_custom_call.1} parent=39 // pred_fallthru
          _
        // Predicated region
        $region53: #{tpu_custom_call.1} parent=39 // pred_check
          %p676 = pneg %p219
        $region54: #{tpu_custom_call.1} parent=39 // pred_check_branch
          %678 = sbr.rel (%p676) target = $region56
        $region55: #{tpu_custom_call.1} parent=39 // pred_region
          _
        $region56: #{tpu_custom_call.1} parent=39 // pred_fallthru
          _
      $region40: #{tpu_custom_call.1} parent=5 // pred_fallthru
        _
      %p679 = scmp.le.s32.totalorder 2, %s18
      // Predicated region
      $region57: #{tpu_custom_call.1} parent=5 // pred_check
        %p680 = pneg %p679
      $region58: #{tpu_custom_call.1} parent=5 // pred_check_branch
        %682 = sbr.rel (%p680) target = $region60
      $region59: #{tpu_custom_call.1} parent=5 // pred_region
        %s683 = ssub.s32 %s18, 2
        // Predicated region
        $region61: #{tpu_custom_call.1} parent=59 // pred_check
          %p684 = pneg %p173
        $region62: #{tpu_custom_call.1} parent=59 // pred_check_branch
          %686 = sbr.rel (%p684) target = $region64
        $region63: #{tpu_custom_call.1} parent=59 // pred_region
          %s687 = sand.u32 %s158, 1
          %s688 = scalar_lea.sflag [#allocation4], %s687
          %s689 = sand.u32 %s158, 1
          %s690 = smul.addr %s689, 2
          %s691 = scalar_lea.vmem [#allocation3], %s690
          %692 = dma.done %s688, 32
        $region64: #{tpu_custom_call.1} parent=59 // pred_fallthru
          _
        // Predicated region
        $region65: #{tpu_custom_call.1} parent=59 // pred_check
          %p693 = pneg %p199
        $region66: #{tpu_custom_call.1} parent=59 // pred_check_branch
          %695 = sbr.rel (%p693) target = $region68
        $region67: #{tpu_custom_call.1} parent=59 // pred_region
          %p696 = scmp.lt.s32.totalorder %s29, 1
          %s697 = scalar_select %p696, %s29, 1
          %s698 = scalar_lea.vmem %s6, %s697
        $region68: #{tpu_custom_call.1} parent=59 // pred_fallthru
          _
        // Predicated region
        $region69: #{tpu_custom_call.1} parent=59 // pred_check
          %p699 = pneg %p225
        $region70: #{tpu_custom_call.1} parent=59 // pred_check_branch
          %701 = sbr.rel (%p699) target = $region72
        $region71: #{tpu_custom_call.1} parent=59 // pred_region
          %p702 = scmp.lt.s32.totalorder %s29, 1
          %s703 = scalar_select %p702, %s29, 1
          %s704 = scalar_lea.vmem %s7, %s703
        $region72: #{tpu_custom_call.1} parent=59 // pred_fallthru
          _
      $region60: #{tpu_custom_call.1} parent=5 // pred_fallthru
        _
    $region6: #{tpu_custom_call.1} parent=1 // loop_footer
      %s22 = sadd.s32 1, %s18
    $region7: #{tpu_custom_call.1} parent=1 // loop_footer_branch
      %17 = sbr.rel target = $region3
    $region8: #{tpu_custom_call.1} parent=1 // loop_exit
      _
    %705 = vsyncpa [#allocation4], 1
    %s706 = scalar_lea.sflag [#allocation4], 1
    %707 = vsyncpa %s706, 1

</llo_original>
